<compile_context>
chip_gen: v5e
topology: v5e:2x2
jax: 0.10.0
libtpu: 0.0.40
codegen_flags: <defaults>
</compile_context>

<pallas_src>
import functools

import jax
import jax.numpy as jnp
from jax.experimental import pallas as pl
from jax.experimental.pallas import tpu as pltpu

LANE = 128
SUBLANE = 8


def _round_up(n, m):
    return ((n + m - 1) // m) * m


def mlp_kernel(x_ref, w1_ref, b1_ref, w2_ref, b2_ref, w3_ref, b3_ref, o_ref):
    # Three MXU matmuls (bf16 in, f32 accumulate) + f32 bias adds on the VPU.
    x = x_ref[...]
    h1 = jnp.dot(x, w1_ref[...], preferred_element_type=jnp.float32) + b1_ref[...]
    h2 = jnp.dot(h1.astype(w2_ref.dtype), w2_ref[...],
                 preferred_element_type=jnp.float32) + b2_ref[...]
    h3 = jnp.dot(h2.astype(w3_ref.dtype), w3_ref[...],
                 preferred_element_type=jnp.float32) + b3_ref[...]
    o_ref[...] = h3.astype(o_ref.dtype)


def mlp_forward(x, params, *, compute_dtype=jnp.bfloat16,
                vmem_budget_bytes=32 * 1024 * 1024):
    """x: [batch, inputdim] f32. params: dict w{1,2,3} [in,out], b{1,2,3} [1,out] (f32)."""
    batch, d0 = x.shape
    d1 = params["w1"].shape[1]
    d2 = params["w2"].shape[1]
    d3 = params["w3"].shape[1]

    # Pad every feature dim to a full 128-lane multiple (zero pad == exact same math).
    d0p, d1p, d2p, d3p = (_round_up(d, LANE) for d in (d0, d1, d2, d3))

    def pad2(a, rows, cols):
        return jnp.pad(a, ((0, rows - a.shape[0]), (0, cols - a.shape[1])))

    w1 = pad2(params["w1"], d0p, d1p).astype(compute_dtype)
    w2 = pad2(params["w2"], d1p, d2p).astype(compute_dtype)
    w3 = pad2(params["w3"], d2p, d3p).astype(compute_dtype)
    b1 = pad2(params["b1"].reshape(1, -1), 1, d1p).astype(jnp.float32)
    b2 = pad2(params["b2"].reshape(1, -1), 1, d2p).astype(jnp.float32)
    b3 = pad2(params["b3"].reshape(1, -1), 1, d3p).astype(jnp.float32)

    # Batch tile: largest 8-aligned tile (<=512) whose resident weights + double-buffered
    # x/out tiles + f32 intermediates fit the per-generation-safe VMEM budget.
    bytes_weights = (w1.size + w2.size + w3.size) * 2 + (b1.size + b2.size + b3.size) * 4
    tb = min(512, _round_up(batch, SUBLANE))
    while tb > SUBLANE:
        per_tile = (2 * tb * d0p * 2          # double-buffered bf16 x tile
                    + 2 * tb * d3p * 4        # double-buffered f32 out tile
                    + tb * (d1p + d2p) * 4)   # f32 intermediates h1/h2
        if bytes_weights + per_tile <= vmem_budget_bytes:
            break
        tb //= 2
    tb = max(tb, SUBLANE)

    batch_p = _round_up(batch, tb)
    xp = jnp.pad(x, ((0, batch_p - batch), (0, d0p - d0))).astype(compute_dtype)

    grid = (batch_p // tb,)
    flops = 2 * batch_p * (d0p * d1p + d1p * d2p + d2p * d3p)
    bytes_accessed = (xp.size * 2 + bytes_weights + batch_p * d3p * 4)
    cost = pl.CostEstimate(flops=flops, transcendentals=0,
                           bytes_accessed=bytes_accessed)

    out = pl.pallas_call(
        mlp_kernel,
        out_shape=jax.ShapeDtypeStruct((batch_p, d3p), jnp.float32),
        grid=grid,
        in_specs=[
            pl.BlockSpec((tb, d0p), lambda i: (i, 0)),    # x tile streams over batch
            pl.BlockSpec((d0p, d1p), lambda i: (0, 0)),   # weights/biases stay resident
            pl.BlockSpec((1, d1p), lambda i: (0, 0)),
            pl.BlockSpec((d1p, d2p), lambda i: (0, 0)),
            pl.BlockSpec((1, d2p), lambda i: (0, 0)),
            pl.BlockSpec((d2p, d3p), lambda i: (0, 0)),
            pl.BlockSpec((1, d3p), lambda i: (0, 0)),
        ],
        out_specs=pl.BlockSpec((tb, d3p), lambda i: (i, 0)),   # lane-dense output store
        compiler_params=pltpu.CompilerParams(
            dimension_semantics=("parallel",),            # shard batch tiles over TCs (v7x)
            vmem_limit_bytes=vmem_budget_bytes,
        ),
        cost_estimate=cost,
    )(xp, w1, b1, w2, b2, w3, b3)

    return out[:batch, :d3]


def init_params(key, inputdim, outputdim):
    """Deterministic init mimicking PyTorch nn.Linear default (uniform +-1/sqrt(fan_in)).
    Weights stored [in, out] (transpose of torch's [out, in]); biases [1, out]."""
    # TODO(synk): init assumes inputdim divisible by 4 (matches the torch module's // 2, // 4).
    dims = [(inputdim, inputdim // 2),
            (inputdim // 2, inputdim // 4),
            (inputdim // 4, outputdim)]
    params = {}
    for i, (fan_in, fan_out) in enumerate(dims, start=1):
        key, kw, kb = jax.random.split(key, 3)
        bound = 1.0 / (fan_in ** 0.5)
        params[f"w{i}"] = jax.random.uniform(
            kw, (fan_in, fan_out), jnp.float32, minval=-bound, maxval=bound)
        params[f"b{i}"] = jax.random.uniform(
            kb, (1, fan_out), jnp.float32, minval=-bound, maxval=bound)
    return params


if __name__ == "__main__":
    batch, inputdim, outputdim = 8, 64, 8
    key = jax.random.PRNGKey(0)
    key, kx = jax.random.split(key)
    x = jax.random.normal(kx, (batch, inputdim), jnp.float32)
    params = init_params(key, inputdim, outputdim)

    fwd = jax.jit(functools.partial(mlp_forward))
    out = fwd(x, params)
    jax.block_until_ready(out)

    # pure-JAX f32 reference (kernel uses bf16 MXU operands -> loose tolerance)
    ref = x
    for i in (1, 2, 3):
        ref = ref @ params[f"w{i}"] + params[f"b{i}"]
    assert out.shape == (batch, outputdim)
    assert jnp.allclose(out, ref, atol=5e-2, rtol=5e-2), (
        f"max abs diff {jnp.max(jnp.abs(out - ref))}")
    print("KERNEL_OK")
</pallas_src>

<mosaic_0001>
module attributes {stable_mosaic.version = 11 : i64} {
  func.func @mlp_kernel(%arg0: i32, %arg1: memref<8x128xbf16, #tpu.memory_space<vmem>>, %arg2: memref<128x128xbf16, #tpu.memory_space<vmem>>, %arg3: memref<1x128xf32, #tpu.memory_space<vmem>>, %arg4: memref<128x128xbf16, #tpu.memory_space<vmem>>, %arg5: memref<1x128xf32, #tpu.memory_space<vmem>>, %arg6: memref<128x128xbf16, #tpu.memory_space<vmem>>, %arg7: memref<1x128xf32, #tpu.memory_space<vmem>>, %arg8: memref<8x128xf32, #tpu.memory_space<vmem>>) attributes {dimension_semantics = [#tpu.dimension_semantics<parallel>], iteration_bounds = array<i64: 1>, scalar_prefetch = 0 : i64, scratch_operands = 0 : i64, tpu.core_type = #tpu.core_type<tc>, window_params = [{transform_indices = @transform_0, window_bounds = array<i64: 8, 128>}, {pipeline_mode = #tpu.pipeline_mode<synchronous>, transform_indices = @transform_1, window_bounds = array<i64: 128, 128>}, {pipeline_mode = #tpu.pipeline_mode<synchronous>, transform_indices = @transform_2, window_bounds = array<i64: 1, 128>}, {pipeline_mode = #tpu.pipeline_mode<synchronous>, transform_indices = @transform_3, window_bounds = array<i64: 128, 128>}, {pipeline_mode = #tpu.pipeline_mode<synchronous>, transform_indices = @transform_4, window_bounds = array<i64: 1, 128>}, {pipeline_mode = #tpu.pipeline_mode<synchronous>, transform_indices = @transform_5, window_bounds = array<i64: 128, 128>}, {pipeline_mode = #tpu.pipeline_mode<synchronous>, transform_indices = @transform_6, window_bounds = array<i64: 1, 128>}, {transform_indices = @transform_7, window_bounds = array<i64: 8, 128>}]} {
    %c0 = arith.constant 0 : index
    %c0_0 = arith.constant 0 : index
    %0 = vector.load %arg1[%c0, %c0_0] : memref<8x128xbf16, #tpu.memory_space<vmem>>, vector<8x128xbf16>
    %c0_1 = arith.constant 0 : index
    %c0_2 = arith.constant 0 : index
    %1 = vector.load %arg2[%c0_1, %c0_2] : memref<128x128xbf16, #tpu.memory_space<vmem>>, vector<128x128xbf16>
    %cst = arith.constant dense<0.000000e+00> : vector<8x128xf32>
    %2 = tpu.matmul %0, %1, %cst {dimension_numbers = #tpu.dot_dimension_numbers<[1], [0], [0], [1], [0, 0, 1, 1], [], []>} : vector<8x128xbf16>, vector<128x128xbf16>, vector<8x128xf32> -> vector<8x128xf32>
    %c0_3 = arith.constant 0 : index
    %c0_4 = arith.constant 0 : index
    %3 = vector.load %arg3[%c0_3, %c0_4] : memref<1x128xf32, #tpu.memory_space<vmem>>, vector<1x128xf32>
    %4 = vector.broadcast %3 : vector<1x128xf32> to vector<8x128xf32>
    %5 = arith.addf %2, %4 : vector<8x128xf32>
    %6 = arith.truncf %5 : vector<8x128xf32> to vector<8x128xbf16>
    %c0_5 = arith.constant 0 : index
    %c0_6 = arith.constant 0 : index
    %7 = vector.load %arg4[%c0_5, %c0_6] : memref<128x128xbf16, #tpu.memory_space<vmem>>, vector<128x128xbf16>
    %cst_7 = arith.constant dense<0.000000e+00> : vector<8x128xf32>
    %8 = tpu.matmul %6, %7, %cst_7 {dimension_numbers = #tpu.dot_dimension_numbers<[1], [0], [0], [1], [0, 0, 1, 1], [], []>} : vector<8x128xbf16>, vector<128x128xbf16>, vector<8x128xf32> -> vector<8x128xf32>
    %c0_8 = arith.constant 0 : index
    %c0_9 = arith.constant 0 : index
    %9 = vector.load %arg5[%c0_8, %c0_9] : memref<1x128xf32, #tpu.memory_space<vmem>>, vector<1x128xf32>
    %10 = vector.broadcast %9 : vector<1x128xf32> to vector<8x128xf32>
    %11 = arith.addf %8, %10 : vector<8x128xf32>
    %12 = arith.truncf %11 : vector<8x128xf32> to vector<8x128xbf16>
    %c0_10 = arith.constant 0 : index
    %c0_11 = arith.constant 0 : index
    %13 = vector.load %arg6[%c0_10, %c0_11] : memref<128x128xbf16, #tpu.memory_space<vmem>>, vector<128x128xbf16>
    %cst_12 = arith.constant dense<0.000000e+00> : vector<8x128xf32>
    %14 = tpu.matmul %12, %13, %cst_12 {dimension_numbers = #tpu.dot_dimension_numbers<[1], [0], [0], [1], [0, 0, 1, 1], [], []>} : vector<8x128xbf16>, vector<128x128xbf16>, vector<8x128xf32> -> vector<8x128xf32>
    %c0_13 = arith.constant 0 : index
    %c0_14 = arith.constant 0 : index
    %15 = vector.load %arg7[%c0_13, %c0_14] : memref<1x128xf32, #tpu.memory_space<vmem>>, vector<1x128xf32>
    %16 = vector.broadcast %15 : vector<1x128xf32> to vector<8x128xf32>
    %17 = arith.addf %14, %16 : vector<8x128xf32>
    %c0_15 = arith.constant 0 : index
    %c0_16 = arith.constant 0 : index
    %18 = vector.load %arg8[%c0_15, %c0_16] : memref<8x128xf32, #tpu.memory_space<vmem>>, vector<8x128xf32>
    tpu.vector_store %arg8[%c0_15, %c0_16], %17 {strides = array<i32>} : memref<8x128xf32, #tpu.memory_space<vmem>>, vector<8x128xf32>,
    return
  }
  func.func @transform_0(%arg0: i32) -> (i32, i32) {
    %c0_i32 = arith.constant 0 : i32
    %c0_i32_0 = arith.constant 0 : i32
    return %arg0, %c0_i32 : i32, i32
  }
  func.func @transform_1(%arg0: i32) -> (i32, i32) {
    %c0_i32 = arith.constant 0 : i32
    %c0_i32_0 = arith.constant 0 : i32
    %c0_i32_1 = arith.constant 0 : i32
    return %c0_i32, %c0_i32_0 : i32, i32
  }
  func.func @transform_2(%arg0: i32) -> (i32, i32) {
    %c0_i32 = arith.constant 0 : i32
    %c0_i32_0 = arith.constant 0 : i32
    %c0_i32_1 = arith.constant 0 : i32
    return %c0_i32, %c0_i32_0 : i32, i32
  }
  func.func @transform_3(%arg0: i32) -> (i32, i32) {
    %c0_i32 = arith.constant 0 : i32
    %c0_i32_0 = arith.constant 0 : i32
    %c0_i32_1 = arith.constant 0 : i32
    return %c0_i32, %c0_i32_0 : i32, i32
  }
  func.func @transform_4(%arg0: i32) -> (i32, i32) {
    %c0_i32 = arith.constant 0 : i32
    %c0_i32_0 = arith.constant 0 : i32
    %c0_i32_1 = arith.constant 0 : i32
    return %c0_i32, %c0_i32_0 : i32, i32
  }
  func.func @transform_5(%arg0: i32) -> (i32, i32) {
    %c0_i32 = arith.constant 0 : i32
    %c0_i32_0 = arith.constant 0 : i32
    %c0_i32_1 = arith.constant 0 : i32
    return %c0_i32, %c0_i32_0 : i32, i32
  }
  func.func @transform_6(%arg0: i32) -> (i32, i32) {
    %c0_i32 = arith.constant 0 : i32
    %c0_i32_0 = arith.constant 0 : i32
    %c0_i32_1 = arith.constant 0 : i32
    return %c0_i32, %c0_i32_0 : i32, i32
  }
  func.func @transform_7(%arg0: i32) -> (i32, i32) {
    %c0_i32 = arith.constant 0 : i32
    %c0_i32_0 = arith.constant 0 : i32
    return %arg0, %c0_i32 : i32, i32
  }
}

</mosaic_0001>

<llo_original>
// kernel: mlp_forward.1
$region0: #{mlp_forward.1}
  #allocation0 [shape = 'u32[]', space=smem, size = 0x4, offset = 0x4, fixed_abs, tag = 'smem constant byte address 0x4 - core index']
  #allocation1 [shape = 'u32[72,128]{1,0:T(1,128)}', space=vmem, size = 0x9000, scoped, tag = 'internal scratch']
  %s0 = inlined_call_operand.vmem [shape: bf16[8,128], index: 0, kind: input, shape index: {}]
  %s1 = inlined_call_operand.vmem [shape: bf16[128,128], index: 1, kind: input, shape index: {}]
  %s2 = inlined_call_operand.vmem [shape: f32[1,128], index: 2, kind: input, shape index: {}]
  %s3 = inlined_call_operand.vmem [shape: bf16[128,128], index: 3, kind: input, shape index: {}]
  %s4 = inlined_call_operand.vmem [shape: f32[1,128], index: 4, kind: input, shape index: {}]
  %s5 = inlined_call_operand.vmem [shape: bf16[128,128], index: 5, kind: input, shape index: {}]
  %s6 = inlined_call_operand.vmem [shape: f32[1,128], index: 6, kind: input, shape index: {}]
  %s7 = inlined_call_operand.hbm [shape: f32[8,128], index: 7, kind: output, shape index: {}]
  %s8 = sld [smem:[#allocation0]]
  $region38: #{mlp_forward.1} parent=0
    _
  %s10 = ssub.s32 1, %s8
  %s11 = scalar_select 0, %s10, %s8
  $region1: #{mlp_forward.1} parent=0
    #allocation2 [shape = 'u8[4096]{0}', space=vmem, size = 0x1000, scoped, tag = 'output window, operand 0, single buffered']
    #allocation3 [shape = 's32[1]{0}', space=sflag, size = 0x4, scoped, tag = 'scoped memory for mlp_forward.1']
    %12 = vsyncpa [#allocation3], 0
    // Predicated region
    $region2: #{mlp_forward.1} parent=1 // pred_check
      _
    $region3: #{mlp_forward.1} parent=1 // pred_check_branch
      %14 = sbr.rel (0) target = $region5
    $region4: #{mlp_forward.1} parent=1 // pred_region
      _
    $region5: #{mlp_forward.1} parent=1 // pred_fallthru
      _
    // Predicated region
    $region6: #{mlp_forward.1} parent=1 // pred_check
      _
    $region7: #{mlp_forward.1} parent=1 // pred_check_branch
      %16 = sbr.rel (0) target = $region9
    $region8: #{mlp_forward.1} parent=1 // pred_region
      _
    $region9: #{mlp_forward.1} parent=1 // pred_fallthru
      _
    // Predicated region
    $region10: #{mlp_forward.1} parent=1 // pred_check
      _
    $region11: #{mlp_forward.1} parent=1 // pred_check_branch
      %18 = sbr.rel (0) target = $region13
    $region12: #{mlp_forward.1} parent=1 // pred_region
      _
    $region13: #{mlp_forward.1} parent=1 // pred_fallthru
      _
    // Predicated region
    $region14: #{mlp_forward.1} parent=1 // pred_check
      _
    $region15: #{mlp_forward.1} parent=1 // pred_check_branch
      %20 = sbr.rel (0) target = $region17
    $region16: #{mlp_forward.1} parent=1 // pred_region
      _
    $region17: #{mlp_forward.1} parent=1 // pred_fallthru
      _
    // Predicated region
    $region18: #{mlp_forward.1} parent=1 // pred_check
      _
    $region19: #{mlp_forward.1} parent=1 // pred_check_branch
      %22 = sbr.rel (0) target = $region21
    $region20: #{mlp_forward.1} parent=1 // pred_region
      _
    $region21: #{mlp_forward.1} parent=1 // pred_fallthru
      _
    // Predicated region
    $region22: #{mlp_forward.1} parent=1 // pred_check
      _
    $region23: #{mlp_forward.1} parent=1 // pred_check_branch
      %24 = sbr.rel (0) target = $region25
    $region24: #{mlp_forward.1} parent=1 // pred_region
      _
    $region25: #{mlp_forward.1} parent=1 // pred_fallthru
      _
    // Predicated region
    $region26: #{mlp_forward.1} parent=1 // pred_check
      _
    $region27: #{mlp_forward.1} parent=1 // pred_check_branch
      %26 = sbr.rel (0) target = $region29
    $region28: #{mlp_forward.1} parent=1 // pred_region
      _
    $region29: #{mlp_forward.1} parent=1 // pred_fallthru
      _
    %v27 = vld [vmem:[%s0] sm:$0xf]
    %v28 = vld [vmem:[%s1] sm:$0xf]
    %v29 = vld [vmem:[%s1 + $0x4] sm:$0xf]
    %v30 = vld [vmem:[%s1 + $0x8] sm:$0xf]
    %v31 = vld [vmem:[%s1 + $0xc] sm:$0xf]
    %v32 = vld [vmem:[%s1 + $0x10] sm:$0xf]
    %v33 = vld [vmem:[%s1 + $0x14] sm:$0xf]
    %v34 = vld [vmem:[%s1 + $0x18] sm:$0xf]
    %v35 = vld [vmem:[%s1 + $0x1c] sm:$0xf]
    %v36 = vld [vmem:[%s1 + $0x20] sm:$0xf]
    %v37 = vld [vmem:[%s1 + $0x24] sm:$0xf]
    %v38 = vld [vmem:[%s1 + $0x28] sm:$0xf]
    %v39 = vld [vmem:[%s1 + $0x2c] sm:$0xf]
    %v40 = vld [vmem:[%s1 + $0x30] sm:$0xf]
    %v41 = vld [vmem:[%s1 + $0x34] sm:$0xf]
    %v42 = vld [vmem:[%s1 + $0x38] sm:$0xf]
    %v43 = vld [vmem:[%s1 + $0x3c] sm:$0xf]
    %v44 = vld [vmem:[%s2] sm:$0x1]
    %v46 = vperm.slane %v44, 0
    %v64 = vunpack.c.l.b16 %v28
    %v65 = vunpack.c.l.b16 %v29
    %v66 = vunpack.c.l.b16 %v30
    %v67 = vunpack.c.l.b16 %v31
    %v68 = vunpack.c.l.b16 %v32
    %v69 = vunpack.c.l.b16 %v33
    %v70 = vunpack.c.l.b16 %v34
    %v71 = vunpack.c.l.b16 %v35
    %v72 = vunpack.c.l.b16 %v36
    %v73 = vunpack.c.l.b16 %v37
    %v74 = vunpack.c.l.b16 %v38
    %v75 = vunpack.c.l.b16 %v39
    %v76 = vunpack.c.l.b16 %v40
    %v77 = vunpack.c.l.b16 %v41
    %v78 = vunpack.c.l.b16 %v42
    %v79 = vunpack.c.l.b16 %v43
    %v80 = vpack.c.b16 %v65, %v64
    %v81 = vpack.c.b16 %v67, %v66
    %v82 = vpack.c.b16 %v69, %v68
    %v83 = vpack.c.b16 %v71, %v70
    %v84 = vpack.c.b16 %v73, %v72
    %v85 = vpack.c.b16 %v75, %v74
    %v86 = vpack.c.b16 %v77, %v76
    %v87 = vpack.c.b16 %v79, %v78
    %96 = vmatpush.bf16.msra.mxu0 %v87
    %97 = vmatpush.bf16.msra.mxu0 %v86
    %98 = vmatpush.bf16.msra.mxu0 %v85
    %99 = vmatpush.bf16.msra.mxu0 %v84
    %100 = vmatpush.bf16.msra.mxu0 %v83
    %101 = vmatpush.bf16.msra.mxu0 %v82
    %102 = vmatpush.bf16.msra.mxu0 %v81
    %103 = vmatpush.bf16.msra.mxu0 %v80
    %104 = vmatmul.bf16.gmra.mxu0 %v27
    %v105 = vpop.f32.mrf.mxu0
    %v106 = vadd.f32 %v46, %v105
    %v107 = vpop.f32.mrf.mxu0
    %108 = vdwg.mxu0
    %v109 = vpack.c.bf16 %v106, %v106
    %v110 = vld [vmem:[%s3] sm:$0xf]
    %v111 = vld [vmem:[%s3 + $0x4] sm:$0xf]
    %v112 = vld [vmem:[%s3 + $0x8] sm:$0xf]
    %v113 = vld [vmem:[%s3 + $0xc] sm:$0xf]
    %v114 = vld [vmem:[%s3 + $0x10] sm:$0xf]
    %v115 = vld [vmem:[%s3 + $0x14] sm:$0xf]
    %v116 = vld [vmem:[%s3 + $0x18] sm:$0xf]
    %v117 = vld [vmem:[%s3 + $0x1c] sm:$0xf]
    %v118 = vld [vmem:[%s3 + $0x20] sm:$0xf]
    %v119 = vld [vmem:[%s3 + $0x24] sm:$0xf]
    %v120 = vld [vmem:[%s3 + $0x28] sm:$0xf]
    %v121 = vld [vmem:[%s3 + $0x2c] sm:$0xf]
    %v122 = vld [vmem:[%s3 + $0x30] sm:$0xf]
    %v123 = vld [vmem:[%s3 + $0x34] sm:$0xf]
    %v124 = vld [vmem:[%s3 + $0x38] sm:$0xf]
    %v125 = vld [vmem:[%s3 + $0x3c] sm:$0xf]
    %v126 = vld [vmem:[%s4] sm:$0x1]
    %v128 = vperm.slane %v126, 0
    %v146 = vunpack.c.l.b16 %v110
    %v147 = vunpack.c.l.b16 %v111
    %v148 = vunpack.c.l.b16 %v112
    %v149 = vunpack.c.l.b16 %v113
    %v150 = vunpack.c.l.b16 %v114
    %v151 = vunpack.c.l.b16 %v115
    %v152 = vunpack.c.l.b16 %v116
    %v153 = vunpack.c.l.b16 %v117
    %v154 = vunpack.c.l.b16 %v118
    %v155 = vunpack.c.l.b16 %v119
    %v156 = vunpack.c.l.b16 %v120
    %v157 = vunpack.c.l.b16 %v121
    %v158 = vunpack.c.l.b16 %v122
    %v159 = vunpack.c.l.b16 %v123
    %v160 = vunpack.c.l.b16 %v124
    %v161 = vunpack.c.l.b16 %v125
    %v162 = vpack.c.b16 %v147, %v146
    %v163 = vpack.c.b16 %v149, %v148
    %v164 = vpack.c.b16 %v151, %v150
    %v165 = vpack.c.b16 %v153, %v152
    %v166 = vpack.c.b16 %v155, %v154
    %v167 = vpack.c.b16 %v157, %v156
    %v168 = vpack.c.b16 %v159, %v158
    %v169 = vpack.c.b16 %v161, %v160
    %178 = vmatpush.bf16.msra.mxu0 %v169
    %179 = vmatpush.bf16.msra.mxu0 %v168
    %180 = vmatpush.bf16.msra.mxu0 %v167
    %181 = vmatpush.bf16.msra.mxu0 %v166
    %182 = vmatpush.bf16.msra.mxu0 %v165
    %183 = vmatpush.bf16.msra.mxu0 %v164
    %184 = vmatpush.bf16.msra.mxu0 %v163
    %185 = vmatpush.bf16.msra.mxu0 %v162
    %186 = vmatmul.bf16.gmra.mxu0 %v109
    %v187 = vpop.f32.mrf.mxu0
    %v188 = vadd.f32 %v128, %v187
    %v189 = vpop.f32.mrf.mxu0
    %190 = vdwg.mxu0
    %v191 = vpack.c.bf16 %v188, %v188
    %v192 = vld [vmem:[%s5] sm:$0xf]
    %v193 = vld [vmem:[%s5 + $0x4] sm:$0xf]
    %v194 = vld [vmem:[%s5 + $0x8] sm:$0xf]
    %v195 = vld [vmem:[%s5 + $0xc] sm:$0xf]
    %v196 = vld [vmem:[%s5 + $0x10] sm:$0xf]
    %v197 = vld [vmem:[%s5 + $0x14] sm:$0xf]
    %v198 = vld [vmem:[%s5 + $0x18] sm:$0xf]
    %v199 = vld [vmem:[%s5 + $0x1c] sm:$0xf]
    %v200 = vld [vmem:[%s5 + $0x20] sm:$0xf]
    %v201 = vld [vmem:[%s5 + $0x24] sm:$0xf]
    %v202 = vld [vmem:[%s5 + $0x28] sm:$0xf]
    %v203 = vld [vmem:[%s5 + $0x2c] sm:$0xf]
    %v204 = vld [vmem:[%s5 + $0x30] sm:$0xf]
    %v205 = vld [vmem:[%s5 + $0x34] sm:$0xf]
    %v206 = vld [vmem:[%s5 + $0x38] sm:$0xf]
    %v207 = vld [vmem:[%s5 + $0x3c] sm:$0xf]
    %v208 = vld [vmem:[%s6] sm:$0x1]
    %v210 = vperm.slane %v208, 0
    %v228 = vunpack.c.l.b16 %v192
    %v229 = vunpack.c.l.b16 %v193
    %v230 = vunpack.c.l.b16 %v194
    %v231 = vunpack.c.l.b16 %v195
    %v232 = vunpack.c.l.b16 %v196
    %v233 = vunpack.c.l.b16 %v197
    %v234 = vunpack.c.l.b16 %v198
    %v235 = vunpack.c.l.b16 %v199
    %v236 = vunpack.c.l.b16 %v200
    %v237 = vunpack.c.l.b16 %v201
    %v238 = vunpack.c.l.b16 %v202
    %v239 = vunpack.c.l.b16 %v203
    %v240 = vunpack.c.l.b16 %v204
    %v241 = vunpack.c.l.b16 %v205
    %v242 = vunpack.c.l.b16 %v206
    %v243 = vunpack.c.l.b16 %v207
    %v244 = vpack.c.b16 %v229, %v228
    %v245 = vpack.c.b16 %v231, %v230
    %v246 = vpack.c.b16 %v233, %v232
    %v247 = vpack.c.b16 %v235, %v234
    %v248 = vpack.c.b16 %v237, %v236
    %v249 = vpack.c.b16 %v239, %v238
    %v250 = vpack.c.b16 %v241, %v240
    %v251 = vpack.c.b16 %v243, %v242
    %260 = vmatpush.bf16.msra.mxu0 %v251
    %261 = vmatpush.bf16.msra.mxu0 %v250
    %262 = vmatpush.bf16.msra.mxu0 %v249
    %263 = vmatpush.bf16.msra.mxu0 %v248
    %264 = vmatpush.bf16.msra.mxu0 %v247
    %265 = vmatpush.bf16.msra.mxu0 %v246
    %266 = vmatpush.bf16.msra.mxu0 %v245
    %267 = vmatpush.bf16.msra.mxu0 %v244
    %268 = vmatmul.bf16.gmra.mxu0 %v191
    %v269 = vpop.f32.mrf.mxu0
    %v270 = vadd.f32 %v210, %v269
    %v271 = vpop.f32.mrf.mxu0
    %272 = vdwg.mxu0
    %273 = vst [vmem:[#allocation2] sm:$0xff] %v270
    // Predicated region
    $region30: #{mlp_forward.1} parent=1 // pred_check
      _
    $region31: #{mlp_forward.1} parent=1 // pred_check_branch
      %275 = sbr.rel (0) target = $region33
    $region32: #{mlp_forward.1} parent=1 // pred_region
      %277 = vsyncadd [#allocation3], 0
      %s279 = sshll.u32 [#allocation2], 4
      %s280 = int_to_ptr.vmem [resolvable:$true] %s279
      %s281 = sshll.u32 %s7, 4
      %s282 = int_to_ptr.hbm [resolvable:$true] %s281
      %284 = dma.vmem_to_hbm [thread:$0]  %s280, 128, %s282, [#allocation3]
    $region33: #{mlp_forward.1} parent=1 // pred_fallthru
      _
    // Predicated region
    $region34: #{mlp_forward.1} parent=1 // pred_check
      _
    $region35: #{mlp_forward.1} parent=1 // pred_check_branch
      %286 = sbr.rel (0) target = $region37
    $region36: #{mlp_forward.1} parent=1 // pred_region
      %288 = dma.done [#allocation3], 128
    $region37: #{mlp_forward.1} parent=1 // pred_fallthru
      _
    %289 = vsyncpa [#allocation3], 1

</llo_original>
